<compile_context>
chip_gen: v7x
topology: tpu7x:2x2x1
jax: 0.10.0
libtpu: 0.0.40
codegen_flags: <defaults>
</compile_context>

<pallas_src>
import functools

import jax
import jax.numpy as jnp
from jax.experimental import pallas as pl
from jax.experimental.pallas import tpu as pltpu

HIDDEN = 10  # self.hidden_dimension (and the MLP width) in the PyTorch module


def _round_up(a, m):
    return ((a + m - 1) // m) * m


def _vae_kernel(xin_ref,
                w1_ref, b1_ref, w2_ref, b2_ref,
                w3_ref, b3_ref, w4_ref, b4_ref,
                out_ref,
                *, fp, hp, compute_dtype):
    """Lane-dense VAE forward on one (rows, TB) batch block.

    xin_ref : (Fp+Hp, TB)  rows [0:F) = x^T, rows [Fp:Fp+H) = eps^T (zero padded)
    w*_ref  : (out_p, in_p) PyTorch-oriented fused weights, zero padded, compute_dtype
    b*_ref  : (out_p, 1)    float32 biases, zero padded
    out_ref : (2*Fp+3*Hp, TB)  rows [0:2Fp)=dec, [2Fp:2Fp+2Hp)=enc, rest = z
    """
    cd = compute_dtype

    x = xin_ref[0:fp, :]             # (Fp, TB)
    eps = xin_ref[fp:fp + hp, :]     # (Hp, TB)

    def mm(w_ref, a):
        # Weights are already compute_dtype (host pre-cast); only the streamed
        # activation is cast here (no-op when compute_dtype == float32).
        return jnp.dot(w_ref[...], a.astype(cd),
                       preferred_element_type=jnp.float32)

    # ---- encode: h1 = relu(W1 @ x + b1) ----
    h1 = jnp.maximum(mm(w1_ref, x) + b1_ref[...], 0.0)             # (Hp, TB)

    # ---- fused encoder heads: enc = [mu_latent ; logvar_latent] (8-aligned) ----
    enc = mm(w2_ref, h1) + b2_ref[...]                             # (2Hp, TB)
    mu_lat = enc[0:hp, :]
    logvar_lat = enc[hp:2 * hp, :]

    # ---- reparameterize: z = mu + eps * exp(0.5*logvar)  (padded rows stay 0) ----
    z = mu_lat + eps * jnp.exp(0.5 * logvar_lat)                   # (Hp, TB)

    # ---- decode: h3 = relu(W3 @ z + b3) ----
    h3 = jnp.maximum(mm(w3_ref, z) + b3_ref[...], 0.0)             # (Hp, TB)

    # ---- fused decoder heads: dec = [mu_output ; logvar_output] ----
    dec = mm(w4_ref, h3) + b4_ref[...]                             # (2Fp, TB)

    # One packed lane-dense output; sub-slice stores are 8-sublane aligned.
    od = out_ref.dtype
    out_ref[0:2 * fp, :] = dec.astype(od)
    out_ref[2 * fp:2 * fp + 2 * hp, :] = enc.astype(od)
    out_ref[2 * fp + 2 * hp:2 * fp + 3 * hp, :] = z.astype(od)


def vae_forward(x, eps, kp, *, block_rows=1024,
                compute_dtype=jnp.float32, out_dtype=jnp.float32):
    """VAE forward in one Pallas kernel, streaming batch blocks on the lane axis.

    x   : (B, n_features) float32
    eps : (B, HIDDEN)     float32  -- the randn_like sample for reparameterize
    kp  : packed/padded params from pack_params()
    Returns (mu_output, logvar_output, mu_latent, logvar_latent, z), all (B, ...).
    """
    B, F = x.shape
    assert eps.shape == (B, HIDDEN)
    Fp = _round_up(F, 8)
    Hp = _round_up(HIDDEN, 8)
    R_in = Fp + Hp
    R_out = 2 * Fp + 3 * Hp

    # Batch lives on the lane axis: TB multiple of 128, batch padded to TB.
    TB = max(128, min(_round_up(block_rows, 128), _round_up(B, 128)))
    Bp = _round_up(B, TB)

    # Host-side layout plumbing: single streamed input (Fp+Hp, Bp) = [x^T ; eps^T].
    xT = jnp.pad(x.T, ((0, Fp - F), (0, Bp - B)))
    eT = jnp.pad(eps.T, ((0, Hp - HIDDEN), (0, Bp - B)))
    xin = jnp.concatenate([xT, eT], axis=0)

    w1, b1 = kp["w1"], kp["b1"]
    w2, b2 = kp["w2"], kp["b2"]
    w3, b3 = kp["w3"], kp["b3"]
    w4, b4 = kp["w4"], kp["b4"]

    def resident(arr):
        # Full-array block, constant index map: DMA once, VMEM-resident.
        return pl.BlockSpec(arr.shape, lambda i: (0, 0))

    grid = (Bp // TB,)

    # Advisory hint: 4 tiny matmuls + one exp per latent element; memory-bound.
    flops = 2 * Bp * (Hp * Fp + 2 * Hp * Hp + Hp * Hp + 2 * Fp * Hp)
    weight_bytes = sum(int(a.size) * a.dtype.itemsize
                       for a in (w1, b1, w2, b2, w3, b3, w4, b4))
    bytes_accessed = (Bp * R_in * 4
                      + Bp * R_out * jnp.dtype(out_dtype).itemsize
                      + weight_bytes)
    cost = pl.CostEstimate(flops=flops, transcendentals=Bp * Hp,
                           bytes_accessed=bytes_accessed)

    out_pack = pl.pallas_call(
        functools.partial(_vae_kernel, fp=Fp, hp=Hp, compute_dtype=compute_dtype),
        out_shape=jax.ShapeDtypeStruct((R_out, Bp), out_dtype),
        grid=grid,
        in_specs=[
            pl.BlockSpec((R_in, TB), lambda i: (0, i)),   # [x^T ; eps^T] stream
            resident(w1), resident(b1),
            resident(w2), resident(b2),
            resident(w3), resident(b3),
            resident(w4), resident(b4),
        ],
        out_specs=pl.BlockSpec((R_out, TB), lambda i: (0, i)),
        compiler_params=pltpu.CompilerParams(
            dimension_semantics=("parallel",),   # batch blocks shard across TCs
        ),
        cost_estimate=cost,
    )(xin, w1, b1, w2, b2, w3, b3, w4, b4)

    # Host-side unpack: back to (batch, features), drop batch + head padding.
    o = out_pack.T[:B].astype(jnp.float32)
    mu_out = o[:, 0:F]
    logvar_out = o[:, Fp:Fp + F]
    mu_lat = o[:, 2 * Fp:2 * Fp + HIDDEN]
    logvar_lat = o[:, 2 * Fp + Hp:2 * Fp + Hp + HIDDEN]
    z = o[:, 2 * Fp + 2 * Hp:2 * Fp + 2 * Hp + HIDDEN]
    return mu_out, logvar_out, mu_lat, logvar_lat, z


def init_params(key, n_features):
    """Deterministic init with PyTorch nn.Linear shapes: weight (out, in), bias (out,)."""
    def linear(k, fan_in, fan_out):
        kw, kb = jax.random.split(k)
        bound = 1.0 / jnp.sqrt(jnp.float32(fan_in))
        w = jax.random.uniform(kw, (fan_out, fan_in), jnp.float32, -bound, bound)
        b = jax.random.uniform(kb, (fan_out,), jnp.float32, -bound, bound)
        return w, b

    ks = jax.random.split(key, 6)
    p = {}
    p["w1"], p["b1"] = linear(ks[0], n_features, 10)      # fc1
    p["w21"], p["b21"] = linear(ks[1], 10, 10)            # fc21
    p["w22"], p["b22"] = linear(ks[2], 10, HIDDEN)        # fc22
    p["w3"], p["b3"] = linear(ks[3], HIDDEN, 10)          # fc3
    p["w41"], p["b41"] = linear(ks[4], 10, n_features)    # fc41
    p["w42"], p["b42"] = linear(ks[5], 10, n_features)    # fc42
    return p


def pack_params(raw, n_features, *, compute_dtype=jnp.float32):
    """Pad + fuse PyTorch-oriented weights for the lane-dense kernel.

    Paired heads (fc21/fc22, fc41/fc42) are fused along the OUT (sublane) axis,
    each padded to a multiple of 8 rows so in-kernel head slices are
    tile-aligned. Padded weight rows/cols and bias rows are zero. Weights are
    pre-cast to compute_dtype host-side; biases stay float32.
    """
    F = n_features
    Fp = _round_up(F, 8)
    Hp = _round_up(HIDDEN, 8)

    def pw(w, out_p, in_p):
        return jnp.pad(w, ((0, out_p - w.shape[0]), (0, in_p - w.shape[1])))

    def pb(b, out_p):
        return jnp.pad(b, (0, out_p - b.shape[0])).reshape(out_p, 1)

    w1 = pw(raw["w1"], Hp, Fp)
    w2 = jnp.concatenate([pw(raw["w21"], Hp, Hp), pw(raw["w22"], Hp, Hp)], axis=0)
    w3 = pw(raw["w3"], Hp, Hp)
    w4 = jnp.concatenate([pw(raw["w41"], Fp, Hp), pw(raw["w42"], Fp, Hp)], axis=0)
    return {
        "w1": w1.astype(compute_dtype), "b1": pb(raw["b1"], Hp),
        "w2": w2.astype(compute_dtype),
        "b2": jnp.concatenate([pb(raw["b21"], Hp), pb(raw["b22"], Hp)], axis=0),
        "w3": w3.astype(compute_dtype), "b3": pb(raw["b3"], Hp),
        "w4": w4.astype(compute_dtype),
        "b4": jnp.concatenate([pb(raw["b41"], Fp), pb(raw["b42"], Fp)], axis=0),
    }


def _reference_forward(x, eps, p):
    """Pure-JAX reference of the PyTorch forward (f32, highest precision)."""
    hi = jax.lax.Precision.HIGHEST
    mm = lambda a, w: jnp.dot(a, w.T, precision=hi)
    h1 = jnp.maximum(mm(x, p["w1"]) + p["b1"], 0.0)
    mu_lat = mm(h1, p["w21"]) + p["b21"]
    logvar_lat = mm(h1, p["w22"]) + p["b22"]
    z = mu_lat + eps * jnp.exp(0.5 * logvar_lat)
    h3 = jnp.maximum(mm(z, p["w3"]) + p["b3"], 0.0)
    mu_out = mm(h3, p["w41"]) + p["b41"]
    logvar_out = mm(h3, p["w42"]) + p["b42"]
    return mu_out, logvar_out, mu_lat, logvar_lat, z


if __name__ == "__main__":
    key = jax.random.PRNGKey(0)
    k_x, k_eps, k_p = jax.random.split(key, 3)

    batch = 256
    n_features = 16

    x = jax.random.normal(k_x, (batch, n_features), jnp.float32)
    # TODO(synk): torch.randn_like inside reparameterize is supplied here as an
    # explicit host-side eps input (deterministic); in-kernel pltpu.prng_* could
    # generate it on-chip instead.
    eps = jax.random.normal(k_eps, (batch, HIDDEN), jnp.float32)

    raw = init_params(k_p, n_features)
    # f32 end-to-end for a tight correctness check (and the right choice on v5e).
    # On v6e/v7x pass compute_dtype=jnp.bfloat16 (and optionally
    # out_dtype=jnp.bfloat16) and loosen tolerances.
    kp = pack_params(raw, n_features, compute_dtype=jnp.float32)

    # block_rows=128 -> 2 grid steps at batch=256 (lets v7x megacore split the
    # batch); production default is 1024 rows/block.
    outs = vae_forward(x, eps, kp, block_rows=128,
                       compute_dtype=jnp.float32, out_dtype=jnp.float32)
    outs = jax.block_until_ready(outs)

    refs = _reference_forward(x, eps, raw)
    names = ("mu_output", "logvar_output", "mu_latent", "logvar_latent", "z")
    for name, got, want in zip(names, outs, refs):
        assert got.shape == want.shape, (name, got.shape, want.shape)
        assert jnp.allclose(got, want, atol=3e-5, rtol=3e-5), (
            name, float(jnp.max(jnp.abs(got - want))))

    print("KERNEL_OK")
</pallas_src>

<mosaic_0001>
module attributes {stable_mosaic.version = 11 : i64} {
  func.func @_vae_kernel(%arg0: i32, %arg1: memref<32x128xf32, #tpu.memory_space<vmem>>, %arg2: memref<16x16xf32, #tpu.memory_space<vmem>>, %arg3: memref<16x1xf32, #tpu.memory_space<vmem>>, %arg4: memref<32x16xf32, #tpu.memory_space<vmem>>, %arg5: memref<32x1xf32, #tpu.memory_space<vmem>>, %arg6: memref<16x16xf32, #tpu.memory_space<vmem>>, %arg7: memref<16x1xf32, #tpu.memory_space<vmem>>, %arg8: memref<32x16xf32, #tpu.memory_space<vmem>>, %arg9: memref<32x1xf32, #tpu.memory_space<vmem>>, %arg10: memref<80x128xf32, #tpu.memory_space<vmem>>) attributes {dimension_semantics = [#tpu.dimension_semantics<parallel>], iteration_bounds = array<i64: 2>, scalar_prefetch = 0 : i64, scratch_operands = 0 : i64, tpu.core_type = #tpu.core_type<tc>, window_params = [{transform_indices = @transform_0, window_bounds = array<i64: 32, 128>}, {pipeline_mode = #tpu.pipeline_mode<synchronous>, transform_indices = @transform_1, window_bounds = array<i64: 16, 16>}, {pipeline_mode = #tpu.pipeline_mode<synchronous>, transform_indices = @transform_2, window_bounds = array<i64: 16, 1>}, {pipeline_mode = #tpu.pipeline_mode<synchronous>, transform_indices = @transform_3, window_bounds = array<i64: 32, 16>}, {pipeline_mode = #tpu.pipeline_mode<synchronous>, transform_indices = @transform_4, window_bounds = array<i64: 32, 1>}, {pipeline_mode = #tpu.pipeline_mode<synchronous>, transform_indices = @transform_5, window_bounds = array<i64: 16, 16>}, {pipeline_mode = #tpu.pipeline_mode<synchronous>, transform_indices = @transform_6, window_bounds = array<i64: 16, 1>}, {pipeline_mode = #tpu.pipeline_mode<synchronous>, transform_indices = @transform_7, window_bounds = array<i64: 32, 16>}, {pipeline_mode = #tpu.pipeline_mode<synchronous>, transform_indices = @transform_8, window_bounds = array<i64: 32, 1>}, {transform_indices = @transform_9, window_bounds = array<i64: 80, 128>}]} {
    %c0 = arith.constant 0 : index
    %c0_0 = arith.constant 0 : index
    %0 = vector.load %arg1[%c0, %c0_0] : memref<32x128xf32, #tpu.memory_space<vmem>>, vector<16x128xf32>
    %c16 = arith.constant 16 : index
    %c0_1 = arith.constant 0 : index
    %1 = vector.load %arg1[%c16, %c0_1] : memref<32x128xf32, #tpu.memory_space<vmem>>, vector<16x128xf32>
    %c0_2 = arith.constant 0 : index
    %c0_3 = arith.constant 0 : index
    %2 = vector.load %arg2[%c0_2, %c0_3] : memref<16x16xf32, #tpu.memory_space<vmem>>, vector<16x16xf32>
    %cst = arith.constant dense<0.000000e+00> : vector<16x128xf32>
    %3 = tpu.matmul %2, %0, %cst {dimension_numbers = #tpu.dot_dimension_numbers<[1], [0], [0], [1], [0, 0, 1, 1], [], []>} : vector<16x16xf32>, vector<16x128xf32>, vector<16x128xf32> -> vector<16x128xf32>
    %c0_4 = arith.constant 0 : index
    %c0_5 = arith.constant 0 : index
    %4 = vector.load %arg3[%c0_4, %c0_5] : memref<16x1xf32, #tpu.memory_space<vmem>>, vector<16x1xf32>
    %5 = vector.broadcast %4 : vector<16x1xf32> to vector<16x128xf32>
    %6 = arith.addf %3, %5 : vector<16x128xf32>
    %cst_6 = arith.constant 0.000000e+00 : f32
    %7 = vector.broadcast %cst_6 : f32 to vector<16x128xf32>
    %8 = arith.maximumf %6, %7 : vector<16x128xf32>
    %c0_7 = arith.constant 0 : index
    %c0_8 = arith.constant 0 : index
    %9 = vector.load %arg4[%c0_7, %c0_8] : memref<32x16xf32, #tpu.memory_space<vmem>>, vector<32x16xf32>
    %cst_9 = arith.constant dense<0.000000e+00> : vector<32x128xf32>
    %10 = tpu.matmul %9, %8, %cst_9 {dimension_numbers = #tpu.dot_dimension_numbers<[1], [0], [0], [1], [0, 0, 1, 1], [], []>} : vector<32x16xf32>, vector<16x128xf32>, vector<32x128xf32> -> vector<32x128xf32>
    %c0_10 = arith.constant 0 : index
    %c0_11 = arith.constant 0 : index
    %11 = vector.load %arg5[%c0_10, %c0_11] : memref<32x1xf32, #tpu.memory_space<vmem>>, vector<32x1xf32>
    %12 = vector.broadcast %11 : vector<32x1xf32> to vector<32x128xf32>
    %13 = arith.addf %10, %12 : vector<32x128xf32>
    %14 = vector.extract_strided_slice %13 {offsets = [0, 0], sizes = [16, 128], strides = [1, 1]} : vector<32x128xf32> to vector<16x128xf32>
    %15 = vector.extract_strided_slice %13 {offsets = [16, 0], sizes = [16, 128], strides = [1, 1]} : vector<32x128xf32> to vector<16x128xf32>
    %cst_12 = arith.constant 5.000000e-01 : f32
    %16 = vector.broadcast %cst_12 : f32 to vector<16x128xf32>
    %17 = arith.mulf %16, %15 : vector<16x128xf32>
    %18 = math.exp %17 : vector<16x128xf32>
    %19 = arith.mulf %1, %18 : vector<16x128xf32>
    %20 = arith.addf %14, %19 : vector<16x128xf32>
    %c0_13 = arith.constant 0 : index
    %c0_14 = arith.constant 0 : index
    %21 = vector.load %arg6[%c0_13, %c0_14] : memref<16x16xf32, #tpu.memory_space<vmem>>, vector<16x16xf32>
    %cst_15 = arith.constant dense<0.000000e+00> : vector<16x128xf32>
    %22 = tpu.matmul %21, %20, %cst_15 {dimension_numbers = #tpu.dot_dimension_numbers<[1], [0], [0], [1], [0, 0, 1, 1], [], []>} : vector<16x16xf32>, vector<16x128xf32>, vector<16x128xf32> -> vector<16x128xf32>
    %c0_16 = arith.constant 0 : index
    %c0_17 = arith.constant 0 : index
    %23 = vector.load %arg7[%c0_16, %c0_17] : memref<16x1xf32, #tpu.memory_space<vmem>>, vector<16x1xf32>
    %24 = vector.broadcast %23 : vector<16x1xf32> to vector<16x128xf32>
    %25 = arith.addf %22, %24 : vector<16x128xf32>
    %cst_18 = arith.constant 0.000000e+00 : f32
    %26 = vector.broadcast %cst_18 : f32 to vector<16x128xf32>
    %27 = arith.maximumf %25, %26 : vector<16x128xf32>
    %c0_19 = arith.constant 0 : index
    %c0_20 = arith.constant 0 : index
    %28 = vector.load %arg8[%c0_19, %c0_20] : memref<32x16xf32, #tpu.memory_space<vmem>>, vector<32x16xf32>
    %cst_21 = arith.constant dense<0.000000e+00> : vector<32x128xf32>
    %29 = tpu.matmul %28, %27, %cst_21 {dimension_numbers = #tpu.dot_dimension_numbers<[1], [0], [0], [1], [0, 0, 1, 1], [], []>} : vector<32x16xf32>, vector<16x128xf32>, vector<32x128xf32> -> vector<32x128xf32>
    %c0_22 = arith.constant 0 : index
    %c0_23 = arith.constant 0 : index
    %30 = vector.load %arg9[%c0_22, %c0_23] : memref<32x1xf32, #tpu.memory_space<vmem>>, vector<32x1xf32>
    %31 = vector.broadcast %30 : vector<32x1xf32> to vector<32x128xf32>
    %32 = arith.addf %29, %31 : vector<32x128xf32>
    %c0_24 = arith.constant 0 : index
    %c0_25 = arith.constant 0 : index
    %33 = vector.load %arg10[%c0_24, %c0_25] : memref<80x128xf32, #tpu.memory_space<vmem>>, vector<32x128xf32>
    tpu.vector_store %arg10[%c0_24, %c0_25], %32 {strides = array<i32>} : memref<80x128xf32, #tpu.memory_space<vmem>>, vector<32x128xf32>,
    %c32 = arith.constant 32 : index
    %c0_26 = arith.constant 0 : index
    %34 = vector.load %arg10[%c32, %c0_26] : memref<80x128xf32, #tpu.memory_space<vmem>>, vector<32x128xf32>
    tpu.vector_store %arg10[%c32, %c0_26], %13 {strides = array<i32>} : memref<80x128xf32, #tpu.memory_space<vmem>>, vector<32x128xf32>,
    %c64 = arith.constant 64 : index
    %c0_27 = arith.constant 0 : index
    %35 = vector.load %arg10[%c64, %c0_27] : memref<80x128xf32, #tpu.memory_space<vmem>>, vector<16x128xf32>
    tpu.vector_store %arg10[%c64, %c0_27], %20 {strides = array<i32>} : memref<80x128xf32, #tpu.memory_space<vmem>>, vector<16x128xf32>,
    return
  }
  func.func @transform_0(%arg0: i32) -> (i32, i32) {
    %c0_i32 = arith.constant 0 : i32
    %c0_i32_0 = arith.constant 0 : i32
    return %c0_i32, %arg0 : i32, i32
  }
  func.func @transform_1(%arg0: i32) -> (i32, i32) {
    %c0_i32 = arith.constant 0 : i32
    %c0_i32_0 = arith.constant 0 : i32
    %c0_i32_1 = arith.constant 0 : i32
    return %c0_i32, %c0_i32_0 : i32, i32
  }
  func.func @transform_2(%arg0: i32) -> (i32, i32) {
    %c0_i32 = arith.constant 0 : i32
    %c0_i32_0 = arith.constant 0 : i32
    %c0_i32_1 = arith.constant 0 : i32
    return %c0_i32, %c0_i32_0 : i32, i32
  }
  func.func @transform_3(%arg0: i32) -> (i32, i32) {
    %c0_i32 = arith.constant 0 : i32
    %c0_i32_0 = arith.constant 0 : i32
    %c0_i32_1 = arith.constant 0 : i32
    return %c0_i32, %c0_i32_0 : i32, i32
  }
  func.func @transform_4(%arg0: i32) -> (i32, i32) {
    %c0_i32 = arith.constant 0 : i32
    %c0_i32_0 = arith.constant 0 : i32
    %c0_i32_1 = arith.constant 0 : i32
    return %c0_i32, %c0_i32_0 : i32, i32
  }
  func.func @transform_5(%arg0: i32) -> (i32, i32) {
    %c0_i32 = arith.constant 0 : i32
    %c0_i32_0 = arith.constant 0 : i32
    %c0_i32_1 = arith.constant 0 : i32
    return %c0_i32, %c0_i32_0 : i32, i32
  }
  func.func @transform_6(%arg0: i32) -> (i32, i32) {
    %c0_i32 = arith.constant 0 : i32
    %c0_i32_0 = arith.constant 0 : i32
    %c0_i32_1 = arith.constant 0 : i32
    return %c0_i32, %c0_i32_0 : i32, i32
  }
  func.func @transform_7(%arg0: i32) -> (i32, i32) {
    %c0_i32 = arith.constant 0 : i32
    %c0_i32_0 = arith.constant 0 : i32
    %c0_i32_1 = arith.constant 0 : i32
    return %c0_i32, %c0_i32_0 : i32, i32
  }
  func.func @transform_8(%arg0: i32) -> (i32, i32) {
    %c0_i32 = arith.constant 0 : i32
    %c0_i32_0 = arith.constant 0 : i32
    %c0_i32_1 = arith.constant 0 : i32
    return %c0_i32, %c0_i32_0 : i32, i32
  }
  func.func @transform_9(%arg0: i32) -> (i32, i32) {
    %c0_i32 = arith.constant 0 : i32
    %c0_i32_0 = arith.constant 0 : i32
    return %c0_i32, %arg0 : i32, i32
  }
}

</mosaic_0001>

<llo_original>
// kernel: tpu_custom_call.1
$region0: #{tpu_custom_call.1}
  #allocation0 [shape = 'u32[]', space=smem, size = 0x4, offset = 0x4, fixed_abs, tag = 'smem constant byte address 0x4 - core index']
  #allocation1 [shape = 'u32[144,128]{1,0:T(1,128)}', space=vmem, size = 0x12000, scoped, tag = 'internal scratch']
  %s0 = inlined_call_operand.vmem [shape: f32[32,256], index: 0, kind: input, shape index: {}]
  %s1 = inlined_call_operand.vmem [shape: f32[16,16], index: 1, kind: input, shape index: {}]
  %s2 = inlined_call_operand.vmem [shape: f32[16,1], index: 2, kind: input, shape index: {}]
  %s3 = inlined_call_operand.vmem [shape: f32[32,16], index: 3, kind: input, shape index: {}]
  %s4 = inlined_call_operand.vmem [shape: f32[32,1], index: 4, kind: input, shape index: {}]
  %s5 = inlined_call_operand.vmem [shape: f32[16,16], index: 5, kind: input, shape index: {}]
  %s6 = inlined_call_operand.vmem [shape: f32[16,1], index: 6, kind: input, shape index: {}]
  %s7 = inlined_call_operand.vmem [shape: f32[32,16], index: 7, kind: input, shape index: {}]
  %s8 = inlined_call_operand.vmem [shape: f32[32,1], index: 8, kind: input, shape index: {}]
  %s9 = inlined_call_operand.hbm [shape: f32[80,256], index: 9, kind: output, shape index: {}]
  %s10 = sld [smem:[#allocation0]]
  $region107: #{tpu_custom_call.1} parent=0
    _
  %s12 = ssub.s32 1, %s10
  %s13 = scalar_select 0, %s12, %s10
  $region1: #{tpu_custom_call.1} parent=0
    #allocation2 [shape = 'u8[32768]{0}', space=vmem, size = 0x8000, scoped, tag = 'input window, operand 0']
    #allocation3 [shape = 'u8[81920]{0}', space=vmem, size = 0x14000, scoped, tag = 'output window, operand 0']
    #allocation4 [shape = 's32[2]{0}', space=sflag, size = 0x8, scoped, tag = 'scoped memory for tpu_custom_call.1']
    %14 = vsyncpa [#allocation4], 0
    %s15 = scalar_lea.sflag [#allocation4], 1
    %16 = vsyncpa %s15, 0
    loop: start=0, step=1, limit=4
    $region2: #{tpu_custom_call.1} parent=1 // loop_pre_header
      _
    $region3: #{tpu_custom_call.1} parent=1 // loop_header
      %s18 = sphi 0, %s22
      %p19 = scmp.ge.s32.totalorder %s18, 4
      %s28 = sphi 0, %s30
      %s31 = sphi 0, %s28
      %s32 = sphi 0, %s31
      %s48 = sphi 0, %s32
      %s52 = sphi 0, %s52
      %s54 = sphi 0, %s52
      %s55 = sphi 0, %s54
      %s69 = sphi 0, %s55
      %s73 = sphi 0, %s73
      %s75 = sphi 0, %s73
      %s76 = sphi 0, %s75
      %s90 = sphi 0, %s76
      %s94 = sphi 0, %s94
      %s96 = sphi 0, %s94
      %s97 = sphi 0, %s96
      %s111 = sphi 0, %s97
      %s115 = sphi 0, %s115
      %s117 = sphi 0, %s115
      %s118 = sphi 0, %s117
      %s132 = sphi 0, %s118
      %s136 = sphi 0, %s136
      %s138 = sphi 0, %s136
      %s139 = sphi 0, %s138
      %s153 = sphi 0, %s139
      %s157 = sphi 0, %s157
      %s159 = sphi 0, %s157
      %s160 = sphi 0, %s159
      %s174 = sphi 0, %s160
      %s178 = sphi 0, %s178
      %s180 = sphi 0, %s178
      %s181 = sphi 0, %s180
      %s195 = sphi 0, %s181
      %s199 = sphi 0, %s199
      %s201 = sphi 0, %s199
      %s202 = sphi 0, %s201
      %s216 = sphi 0, %s202
      %s222 = sphi 0, %s224
      %s225 = sphi 0, %s222
      %s226 = sphi 0, %s225
      %s242 = sphi 0, %s226
    $region4: #{tpu_custom_call.1} parent=1 // loop_header_branch
      %21 = sbr.rel (%p19) target = $region8
    $region5: #{tpu_custom_call.1} parent=1 // loop_body
      %s23 = ssub.s32 %s18, 1
      %s24 = ssub.s32 %s18, 2
      %s25 = sadd.s32 %s18, 1
      %s26 = ssub.s32 %s18, %s25
      %p27 = scmp.eq.s32.totalorder %s26, 0
      %s29 = sadd.s32 %s28, 1
      %s30 = scalar_select %p27, %s28, %s29
      %p33 = pneg %p27
      %p34 = scmp.eq.s32.totalorder %s18, 1
      %p35 = por %p33, %p34
      %p36 = scmp.ne.s32.totalorder %s28, %s31
      %p37 = scmp.eq.s32.totalorder %s18, 0
      %p38 = por %p36, %p37
      %p39 = scmp.ne.s32.totalorder %s28, %s31
      %p40 = scmp.eq.s32.totalorder %s23, 1
      %p41 = por %p39, %p40
      %p42 = scmp.ne.s32.totalorder %s31, %s32
      %p43 = scmp.eq.s32.totalorder %s23, 0
      %p44 = por %p42, %p43
      %p45 = scmp.ne.s32.totalorder %s31, %s32
      %p46 = scmp.eq.s32.totalorder %s24, 1
      %p47 = por %p45, %p46
      %p49 = scmp.ne.s32.totalorder %s32, %s48
      %p50 = scmp.eq.s32.totalorder %s24, 0
      %p51 = por %p49, %p50
      %s53 = sadd.s32 %s52, 1
      %p56 = scmp.eq.s32.totalorder %s18, 1
      %p57 = scmp.ne.s32.totalorder %s52, %s54
      %p58 = scmp.eq.s32.totalorder %s18, 0
      %p59 = por %p57, %p58
      %p60 = scmp.ne.s32.totalorder %s52, %s54
      %p61 = scmp.eq.s32.totalorder %s23, 1
      %p62 = por %p60, %p61
      %p63 = scmp.ne.s32.totalorder %s54, %s55
      %p64 = scmp.eq.s32.totalorder %s23, 0
      %p65 = por %p63, %p64
      %p66 = scmp.ne.s32.totalorder %s54, %s55
      %p67 = scmp.eq.s32.totalorder %s24, 1
      %p68 = por %p66, %p67
      %p70 = scmp.ne.s32.totalorder %s55, %s69
      %p71 = scmp.eq.s32.totalorder %s24, 0
      %p72 = por %p70, %p71
      %s74 = sadd.s32 %s73, 1
      %p77 = scmp.eq.s32.totalorder %s18, 1
      %p78 = scmp.ne.s32.totalorder %s73, %s75
      %p79 = scmp.eq.s32.totalorder %s18, 0
      %p80 = por %p78, %p79
      %p81 = scmp.ne.s32.totalorder %s73, %s75
      %p82 = scmp.eq.s32.totalorder %s23, 1
      %p83 = por %p81, %p82
      %p84 = scmp.ne.s32.totalorder %s75, %s76
      %p85 = scmp.eq.s32.totalorder %s23, 0
      %p86 = por %p84, %p85
      %p87 = scmp.ne.s32.totalorder %s75, %s76
      %p88 = scmp.eq.s32.totalorder %s24, 1
      %p89 = por %p87, %p88
      %p91 = scmp.ne.s32.totalorder %s76, %s90
      %p92 = scmp.eq.s32.totalorder %s24, 0
      %p93 = por %p91, %p92
      %s95 = sadd.s32 %s94, 1
      %p98 = scmp.eq.s32.totalorder %s18, 1
      %p99 = scmp.ne.s32.totalorder %s94, %s96
      %p100 = scmp.eq.s32.totalorder %s18, 0
      %p101 = por %p99, %p100
      %p102 = scmp.ne.s32.totalorder %s94, %s96
      %p103 = scmp.eq.s32.totalorder %s23, 1
      %p104 = por %p102, %p103
      %p105 = scmp.ne.s32.totalorder %s96, %s97
      %p106 = scmp.eq.s32.totalorder %s23, 0
      %p107 = por %p105, %p106
      %p108 = scmp.ne.s32.totalorder %s96, %s97
      %p109 = scmp.eq.s32.totalorder %s24, 1
      %p110 = por %p108, %p109
      %p112 = scmp.ne.s32.totalorder %s97, %s111
      %p113 = scmp.eq.s32.totalorder %s24, 0
      %p114 = por %p112, %p113
      %s116 = sadd.s32 %s115, 1
      %p119 = scmp.eq.s32.totalorder %s18, 1
      %p120 = scmp.ne.s32.totalorder %s115, %s117
      %p121 = scmp.eq.s32.totalorder %s18, 0
      %p122 = por %p120, %p121
      %p123 = scmp.ne.s32.totalorder %s115, %s117
      %p124 = scmp.eq.s32.totalorder %s23, 1
      %p125 = por %p123, %p124
      %p126 = scmp.ne.s32.totalorder %s117, %s118
      %p127 = scmp.eq.s32.totalorder %s23, 0
      %p128 = por %p126, %p127
      %p129 = scmp.ne.s32.totalorder %s117, %s118
      %p130 = scmp.eq.s32.totalorder %s24, 1
      %p131 = por %p129, %p130
      %p133 = scmp.ne.s32.totalorder %s118, %s132
      %p134 = scmp.eq.s32.totalorder %s24, 0
      %p135 = por %p133, %p134
      %s137 = sadd.s32 %s136, 1
      %p140 = scmp.eq.s32.totalorder %s18, 1
      %p141 = scmp.ne.s32.totalorder %s136, %s138
      %p142 = scmp.eq.s32.totalorder %s18, 0
      %p143 = por %p141, %p142
      %p144 = scmp.ne.s32.totalorder %s136, %s138
      %p145 = scmp.eq.s32.totalorder %s23, 1
      %p146 = por %p144, %p145
      %p147 = scmp.ne.s32.totalorder %s138, %s139
      %p148 = scmp.eq.s32.totalorder %s23, 0
      %p149 = por %p147, %p148
      %p150 = scmp.ne.s32.totalorder %s138, %s139
      %p151 = scmp.eq.s32.totalorder %s24, 1
      %p152 = por %p150, %p151
      %p154 = scmp.ne.s32.totalorder %s139, %s153
      %p155 = scmp.eq.s32.totalorder %s24, 0
      %p156 = por %p154, %p155
      %s158 = sadd.s32 %s157, 1
      %p161 = scmp.eq.s32.totalorder %s18, 1
      %p162 = scmp.ne.s32.totalorder %s157, %s159
      %p163 = scmp.eq.s32.totalorder %s18, 0
      %p164 = por %p162, %p163
      %p165 = scmp.ne.s32.totalorder %s157, %s159
      %p166 = scmp.eq.s32.totalorder %s23, 1
      %p167 = por %p165, %p166
      %p168 = scmp.ne.s32.totalorder %s159, %s160
      %p169 = scmp.eq.s32.totalorder %s23, 0
      %p170 = por %p168, %p169
      %p171 = scmp.ne.s32.totalorder %s159, %s160
      %p172 = scmp.eq.s32.totalorder %s24, 1
      %p173 = por %p171, %p172
      %p175 = scmp.ne.s32.totalorder %s160, %s174
      %p176 = scmp.eq.s32.totalorder %s24, 0
      %p177 = por %p175, %p176
      %s179 = sadd.s32 %s178, 1
      %p182 = scmp.eq.s32.totalorder %s18, 1
      %p183 = scmp.ne.s32.totalorder %s178, %s180
      %p184 = scmp.eq.s32.totalorder %s18, 0
      %p185 = por %p183, %p184
      %p186 = scmp.ne.s32.totalorder %s178, %s180
      %p187 = scmp.eq.s32.totalorder %s23, 1
      %p188 = por %p186, %p187
      %p189 = scmp.ne.s32.totalorder %s180, %s181
      %p190 = scmp.eq.s32.totalorder %s23, 0
      %p191 = por %p189, %p190
      %p192 = scmp.ne.s32.totalorder %s180, %s181
      %p193 = scmp.eq.s32.totalorder %s24, 1
      %p194 = por %p192, %p193
      %p196 = scmp.ne.s32.totalorder %s181, %s195
      %p197 = scmp.eq.s32.totalorder %s24, 0
      %p198 = por %p196, %p197
      %s200 = sadd.s32 %s199, 1
      %p203 = scmp.eq.s32.totalorder %s18, 1
      %p204 = scmp.ne.s32.totalorder %s199, %s201
      %p205 = scmp.eq.s32.totalorder %s18, 0
      %p206 = por %p204, %p205
      %p207 = scmp.ne.s32.totalorder %s199, %s201
      %p208 = scmp.eq.s32.totalorder %s23, 1
      %p209 = por %p207, %p208
      %p210 = scmp.ne.s32.totalorder %s201, %s202
      %p211 = scmp.eq.s32.totalorder %s23, 0
      %p212 = por %p210, %p211
      %p213 = scmp.ne.s32.totalorder %s201, %s202
      %p214 = scmp.eq.s32.totalorder %s24, 1
      %p215 = por %p213, %p214
      %p217 = scmp.ne.s32.totalorder %s202, %s216
      %p218 = scmp.eq.s32.totalorder %s24, 0
      %p219 = por %p217, %p218
      %s220 = ssub.s32 %s18, %s25
      %p221 = scmp.eq.s32.totalorder %s220, 0
      %s223 = sadd.s32 %s222, 1
      %s224 = scalar_select %p221, %s222, %s223
      %p227 = pneg %p221
      %p228 = scmp.eq.s32.totalorder %s18, 1
      %p229 = por %p227, %p228
      %p230 = scmp.ne.s32.totalorder %s222, %s225
      %p231 = scmp.eq.s32.totalorder %s18, 0
      %p232 = por %p230, %p231
      %p233 = scmp.ne.s32.totalorder %s222, %s225
      %p234 = scmp.eq.s32.totalorder %s23, 1
      %p235 = por %p233, %p234
      %p236 = scmp.ne.s32.totalorder %s225, %s226
      %p237 = scmp.eq.s32.totalorder %s23, 0
      %p238 = por %p236, %p237
      %p239 = scmp.ne.s32.totalorder %s225, %s226
      %p240 = scmp.eq.s32.totalorder %s24, 1
      %p241 = por %p239, %p240
      %p243 = scmp.ne.s32.totalorder %s226, %s242
      %p244 = scmp.eq.s32.totalorder %s24, 0
      %p245 = por %p243, %p244
      %p246 = scmp.le.s32.totalorder 1, %s18
      %p247 = scmp.lt.s32.totalorder %s18, 3
      %p248 = pnand %p246, %p247
      %p249 = pneg %p248
      // Predicated region
      $region9: #{tpu_custom_call.1} parent=5 // pred_check
        _
      $region10: #{tpu_custom_call.1} parent=5 // pred_check_branch
        %251 = sbr.rel (%p248) target = $region12
      $region11: #{tpu_custom_call.1} parent=5 // pred_region
        %s252 = ssub.s32 %s18, 1
        // Predicated region
        $region13: #{tpu_custom_call.1} parent=11 // pred_check
          %p253 = pneg %p65
        $region14: #{tpu_custom_call.1} parent=11 // pred_check_branch
          %255 = sbr.rel (%p253) target = $region16
        $region15: #{tpu_custom_call.1} parent=11 // pred_region
          _
        $region16: #{tpu_custom_call.1} parent=11 // pred_fallthru
          _
        // Predicated region
        $region17: #{tpu_custom_call.1} parent=11 // pred_check
          %p256 = pneg %p86
        $region18: #{tpu_custom_call.1} parent=11 // pred_check_branch
          %258 = sbr.rel (%p256) target = $region20
        $region19: #{tpu_custom_call.1} parent=11 // pred_region
          _
        $region20: #{tpu_custom_call.1} parent=11 // pred_fallthru
          _
        // Predicated region
        $region21: #{tpu_custom_call.1} parent=11 // pred_check
          %p259 = pneg %p107
        $region22: #{tpu_custom_call.1} parent=11 // pred_check_branch
          %261 = sbr.rel (%p259) target = $region24
        $region23: #{tpu_custom_call.1} parent=11 // pred_region
          _
        $region24: #{tpu_custom_call.1} parent=11 // pred_fallthru
          _
        // Predicated region
        $region25: #{tpu_custom_call.1} parent=11 // pred_check
          %p262 = pneg %p128
        $region26: #{tpu_custom_call.1} parent=11 // pred_check_branch
          %264 = sbr.rel (%p262) target = $region28
        $region27: #{tpu_custom_call.1} parent=11 // pred_region
          _
        $region28: #{tpu_custom_call.1} parent=11 // pred_fallthru
          _
        // Predicated region
        $region29: #{tpu_custom_call.1} parent=11 // pred_check
          %p265 = pneg %p149
        $region30: #{tpu_custom_call.1} parent=11 // pred_check_branch
          %267 = sbr.rel (%p265) target = $region32
        $region31: #{tpu_custom_call.1} parent=11 // pred_region
          _
        $region32: #{tpu_custom_call.1} parent=11 // pred_fallthru
          _
        // Predicated region
        $region33: #{tpu_custom_call.1} parent=11 // pred_check
          %p268 = pneg %p170
        $region34: #{tpu_custom_call.1} parent=11 // pred_check_branch
          %270 = sbr.rel (%p268) target = $region36
        $region35: #{tpu_custom_call.1} parent=11 // pred_region
          _
        $region36: #{tpu_custom_call.1} parent=11 // pred_fallthru
          _
        // Predicated region
        $region37: #{tpu_custom_call.1} parent=11 // pred_check
          %p271 = pneg %p191
        $region38: #{tpu_custom_call.1} parent=11 // pred_check_branch
          %273 = sbr.rel (%p271) target = $region40
        $region39: #{tpu_custom_call.1} parent=11 // pred_region
          _
        $region40: #{tpu_custom_call.1} parent=11 // pred_fallthru
          _
        // Predicated region
        $region41: #{tpu_custom_call.1} parent=11 // pred_check
          %p274 = pneg %p212
        $region42: #{tpu_custom_call.1} parent=11 // pred_check_branch
          %276 = sbr.rel (%p274) target = $region44
        $region43: #{tpu_custom_call.1} parent=11 // pred_region
          _
        $region44: #{tpu_custom_call.1} parent=11 // pred_fallthru
          _
      $region12: #{tpu_custom_call.1} parent=5 // pred_fallthru
        _
      %p277 = scmp.lt.s32.totalorder %s18, 2
      // Predicated region
      $region45: #{tpu_custom_call.1} parent=5 // pred_check
        %p278 = pneg %p277
      $region46: #{tpu_custom_call.1} parent=5 // pred_check_branch
        %280 = sbr.rel (%p278) target = $region48
      $region47: #{tpu_custom_call.1} parent=5 // pred_region
        // Predicated region
        $region49: #{tpu_custom_call.1} parent=47 // pred_check
          %p281 = pneg %p38
        $region50: #{tpu_custom_call.1} parent=47 // pred_check_branch
          %283 = sbr.rel (%p281) target = $region52
        $region51: #{tpu_custom_call.1} parent=47 // pred_region
          %s284 = sand.u32 %s28, 1
          %s285 = sand.u32 %s28, 1
          %s286 = smul.addr %s285, 32
          %s287 = scalar_lea.vmem [#allocation2], %s286
          %s288 = smul.addr %s18, 8
          %s289 = scalar_lea.vmem %s0, %s288
          // Predicated region
          $region53: #{tpu_custom_call.1} parent=51 // pred_check
            _
          $region54: #{tpu_custom_call.1} parent=51 // pred_check_branch
            %291 = sbr.rel (0) target = $region56
          $region55: #{tpu_custom_call.1} parent=51 // pred_region
            // Predicated region
            $region57: #{tpu_custom_call.1} parent=55 // pred_check
              _
            $region58: #{tpu_custom_call.1} parent=55 // pred_check_branch
              %293 = sbr.rel (0) target = $region60
            $region59: #{tpu_custom_call.1} parent=55 // pred_region
              // Predicated region
              $region72: #{tpu_custom_call.1} parent=59 // pred_check
                _
              $region73: #{tpu_custom_call.1} parent=59 // pred_check_branch
                %314 = sbr.rel (0) target = $region75
              $region74: #{tpu_custom_call.1} parent=59 // pred_region
                loop: start=0, step=1, limit=1
                $region76: #{tpu_custom_call.1} parent=74 // loop_pre_header
                  _
                $region77: #{tpu_custom_call.1} parent=74 // loop_header
                  %s316 = sphi 0, %s320
                  %p317 = scmp.ge.s32.totalorder %s316, 1
                  %s321 = sphi %s289, %s289
                  %s322 = sphi %s287, %s287
                $region78: #{tpu_custom_call.1} parent=74 // loop_header_branch
                  %319 = sbr.rel (%p317) target = $region82
                $region79: #{tpu_custom_call.1} parent=74 // loop_body
                  %v323 = vld [vmem:[%s321] sm:$0xff]
                  %324 = vst [vmem:[%s322] sm:$0xff] %v323
                  %v325 = vld [vmem:[%s321 + $0x10] sm:$0xff]
                  %326 = vst [vmem:[%s322 + $0x8] sm:$0xff] %v325
                  %v327 = vld [vmem:[%s321 + $0x20] sm:$0xff]
                  %328 = vst [vmem:[%s322 + $0x10] sm:$0xff] %v327
                  %v329 = vld [vmem:[%s321 + $0x30] sm:$0xff]
                  %330 = vst [vmem:[%s322 + $0x18] sm:$0xff] %v329
                $region80: #{tpu_custom_call.1} parent=74 // loop_footer
                  %s320 = sadd.s32 1, %s316
                $region81: #{tpu_custom_call.1} parent=74 // loop_footer_branch
                  %315 = sbr.rel target = $region77
                $region82: #{tpu_custom_call.1} parent=74 // loop_exit
                  _
              $region75: #{tpu_custom_call.1} parent=59 // pred_fallthru
                _
              // Predicated region
              $region83: #{tpu_custom_call.1} parent=59 // pred_check
                _
              $region84: #{tpu_custom_call.1} parent=59 // pred_check_branch
                %332 = sbr.rel target = $region86
              $region85: #{tpu_custom_call.1} parent=59 // pred_region
                _
              $region86: #{tpu_custom_call.1} parent=59 // pred_fallthru
                _
            $region60: #{tpu_custom_call.1} parent=55 // pred_fallthru
              _
            // Predicated region
            $region61: #{tpu_custom_call.1} parent=55 // pred_check
              _
            $region62: #{tpu_custom_call.1} parent=55 // pred_check_branch
              %295 = sbr.rel target = $region64
            $region63: #{tpu_custom_call.1} parent=55 // pred_region
              loop: start=0, step=1, limit=1
              $region65: #{tpu_custom_call.1} parent=63 // loop_pre_header
                _
              $region66: #{tpu_custom_call.1} parent=63 // loop_header
                %s298 = sphi 0, %s302
                %p299 = scmp.ge.s32.totalorder %s298, 1
                %s303 = sphi %s289, %s289
                %s304 = sphi %s287, %s287
              $region67: #{tpu_custom_call.1} parent=63 // loop_header_branch
                %301 = sbr.rel (%p299) target = $region71
              $region68: #{tpu_custom_call.1} parent=63 // loop_body
                %v305 = vld [vmem:[%s303] sm:$0xff]
                %306 = vst [vmem:[%s304] sm:$0xff] %v305
                %v307 = vld [vmem:[%s303 + $0x10] sm:$0xff]
                %308 = vst [vmem:[%s304 + $0x8] sm:$0xff] %v307
                %v309 = vld [vmem:[%s303 + $0x20] sm:$0xff]
                %310 = vst [vmem:[%s304 + $0x10] sm:$0xff] %v309
                %v311 = vld [vmem:[%s303 + $0x30] sm:$0xff]
                %312 = vst [vmem:[%s304 + $0x18] sm:$0xff] %v311
              $region69: #{tpu_custom_call.1} parent=63 // loop_footer
                %s302 = sadd.s32 1, %s298
              $region70: #{tpu_custom_call.1} parent=63 // loop_footer_branch
                %297 = sbr.rel target = $region66
              $region71: #{tpu_custom_call.1} parent=63 // loop_exit
                _
            $region64: #{tpu_custom_call.1} parent=55 // pred_fallthru
              _
          $region56: #{tpu_custom_call.1} parent=51 // pred_fallthru
            _
          %333 = vnop
        $region52: #{tpu_custom_call.1} parent=47 // pred_fallthru
          _
      $region48: #{tpu_custom_call.1} parent=5 // pred_fallthru
        _
      %p334 = scmp.le.s32.totalorder 1, %s18
      %p335 = scmp.lt.s32.totalorder %s18, 3
      %p336 = pnand %p334, %p335
      %p337 = pneg %p336
      // Predicated region
      $region87: #{tpu_custom_call.1} parent=5 // pred_check
        _
      $region88: #{tpu_custom_call.1} parent=5 // pred_check_branch
        %339 = sbr.rel (%p336) target = $region90
      $region89: #{tpu_custom_call.1} parent=5 // pred_region
        %s340 = ssub.s32 %s18, 1
        %s341 = sand.u32 %s31, 1
        %s342 = sand.u32 %s31, 1
        %s343 = smul.addr %s342, 32
        %s344 = scalar_lea.vmem [#allocation2], %s343
        // Predicated region
        $region91: #{tpu_custom_call.1} parent=89 // pred_check
          %p345 = pneg %p44
        $region92: #{tpu_custom_call.1} parent=89 // pred_check_branch
          %347 = sbr.rel (%p345) target = $region94
        $region93: #{tpu_custom_call.1} parent=89 // pred_region
          _
        $region94: #{tpu_custom_call.1} parent=89 // pred_fallthru
          _
        %s348 = sand.u32 %s31, 1
        %s349 = sand.u32 %s31, 1
        %s350 = smul.addr %s349, 32
        %s351 = scalar_lea.vmem [#allocation2], %s350
        %p352 = pneg %p44
        %p353 = pneg %p41
        %p354 = pneg %p65
        %p355 = pneg %p62
        %p356 = pneg %p86
        %p357 = pneg %p83
        %p358 = pneg %p107
        %p359 = pneg %p104
        %p360 = pneg %p128
        %p361 = pneg %p125
        %p362 = pneg %p149
        %p363 = pneg %p146
        %p364 = pneg %p170
        %p365 = pneg %p167
        %p366 = pneg %p191
        %p367 = pneg %p188
        %p368 = pneg %p212
        %p369 = pneg %p209
        %p370 = pneg %p238
        %p371 = pneg %p235
        %s372 = sand.u32 %s225, 1
        %s373 = scalar_lea.sflag [#allocation4], %s372
        %s374 = sand.u32 %s225, 1
        %s375 = smul.addr %s374, 80
        %s376 = scalar_lea.vmem [#allocation3], %s375
        %v377 = vld [vmem:[%s344] sm:$0xff]
        %v378 = vld [vmem:[%s344 + $0x8] sm:$0xff]
        %v379 = vld [vmem:[%s344 + $0x10] sm:$0xff]
        %v380 = vld [vmem:[%s344 + $0x18] sm:$0xff]
        %v381 = vld [vmem:[%s1] sm:$0xff]
        %v382 = vld [vmem:[%s1 + $0x8] sm:$0xff]
        %v383 = vld [vmem:[%s2] sm:$0xff]
        %v384 = vld [vmem:[%s2 + $0x8] sm:$0xff]
        %386 = vset.pattern.permute.xlu0 0
        %387 = vperm.xlu0 %386, %v383
        %v388 = vpop.permute.xlu0 %387
        %391 = vset.pattern.permute.xlu0 0
        %392 = vperm.xlu0 %391, %v384
        %v393 = vpop.permute.xlu0 %392
        %vm395 = vcmask 130048
        %v397 = vsel %vm395, %v381, 0
        %v400 = vsel %vm395, %v382, 0
        %402 = vmatprep.subr.mxu0 0.0
        %403 = vmatpush1.msra.mxu0 %v377
        %404 = vmatprep.subr.mxu0 0.0
        %405 = vmatpush1.msra.mxu0 %v378
        %406 = vmatprep.subr.mxu0 0.0
        %407 = vmatpush1.msra.mxu0 0.0
        %408 = vmatprep.subr.mxu0 0.0
        %409 = vmatpush1.msra.mxu0 0.0
        %410 = vmatprep.subr.mxu0 0.0
        %411 = vmatpush1.msra.mxu0 0.0
        %412 = vmatprep.subr.mxu0 0.0
        %413 = vmatpush1.msra.mxu0 0.0
        %414 = vmatprep.subr.mxu0 0.0
        %415 = vmatpush1.msra.mxu0 0.0
        %416 = vmatprep.subr.mxu0 0.0
        %417 = vmatpush1.msra.mxu0 0.0
        %418 = vmatprep.subr.mxu0 0.0
        %419 = vmatpush1.msra.mxu0 0.0
        %420 = vmatprep.subr.mxu0 0.0
        %421 = vmatpush1.msra.mxu0 0.0
        %422 = vmatprep.subr.mxu0 0.0
        %423 = vmatpush1.msra.mxu0 0.0
        %424 = vmatprep.subr.mxu0 0.0
        %425 = vmatpush1.msra.mxu0 0.0
        %426 = vmatprep.subr.mxu0 0.0
        %427 = vmatpush1.msra.mxu0 0.0
        %428 = vmatprep.subr.mxu0 0.0
        %429 = vmatpush1.msra.mxu0 0.0
        %430 = vmatprep.subr.mxu0 0.0
        %431 = vmatpush1.msra.mxu0 0.0
        %432 = vmatprep.subr.mxu0 0.0
        %433 = vmatpush1.msra.mxu0 0.0
        %434 = vmatprep.subr.mxu0 0.0
        %435 = vmatpush1.msra.mxu0 0.0
        %436 = vmatprep.subr.mxu0 0.0
        %437 = vmatpush1.msra.mxu0 0.0
        %438 = vmatprep.subr.mxu0 0.0
        %439 = vmatpush1.msra.mxu0 0.0
        %440 = vmatprep.subr.mxu0 0.0
        %441 = vmatpush1.msra.mxu0 0.0
        %442 = vmatprep.subr.mxu0 0.0
        %443 = vmatpush1.msra.mxu0 0.0
        %444 = vmatprep.subr.mxu0 0.0
        %445 = vmatpush1.msra.mxu0 0.0
        %446 = vmatprep.subr.mxu0 0.0
        %447 = vmatpush1.msra.mxu0 0.0
        %448 = vmatprep.subr.mxu0 0.0
        %449 = vmatpush1.msra.mxu0 0.0
        %450 = vmatprep.subr.mxu0 0.0
        %451 = vmatpush1.msra.mxu0 0.0
        %452 = vmatprep.subr.mxu0 0.0
        %453 = vmatpush1.msra.mxu0 0.0
        %454 = vmatprep.subr.mxu0 0.0
        %455 = vmatpush1.msra.mxu0 0.0
        %456 = vmatprep.subr.mxu0 0.0
        %457 = vmatpush1.msra.mxu0 0.0
        %458 = vmatprep.subr.mxu0 0.0
        %459 = vmatpush1.msra.mxu0 0.0
        %460 = vmatprep.subr.mxu0 0.0
        %461 = vmatpush1.msra.mxu0 0.0
        %462 = vmatprep.subr.mxu0 0.0
        %463 = vmatpush1.msra.mxu0 0.0
        %464 = vmatprep.subr.mxu0 0.0
        %465 = vmatpush1.msra.mxu0 0.0
        %466 = vmatprep.mubr.f32.mxu0 0.0
        %467 = vmatmul.mubr.f32.gmra.mrb[0].mxu0 %v397
        %v468 = vpop.f32.mrb[0].mxu0
        %v469 = vadd.f32 %v388, %v468
        %v470 = vpop.f32.mrb[0].mxu0
        %471 = vmatprep.mubr.f32.mxu0 0.0
        %472 = vmatmul.mubr.f32.gmra.mrb[0].mxu0 %v400
        %v473 = vpop.f32.mrb[0].mxu0
        %v474 = vadd.f32 %v393, %v473
        %v475 = vpop.f32.mrb[0].mxu0
        %476 = vdwg.mxu0
        %v477 = vmax.f32 %v469, 0.0
        %v478 = vmax.f32 %v474, 0.0
        %v479 = vld [vmem:[%s3] sm:$0xff]
        %v480 = vld [vmem:[%s3 + $0x8] sm:$0xff]
        %v481 = vld [vmem:[%s3 + $0x10] sm:$0xff]
        %v482 = vld [vmem:[%s3 + $0x18] sm:$0xff]
        %v483 = vld [vmem:[%s4] sm:$0xff]
        %v484 = vld [vmem:[%s4 + $0x8] sm:$0xff]
        %v485 = vld [vmem:[%s4 + $0x10] sm:$0xff]
        %v486 = vld [vmem:[%s4 + $0x18] sm:$0xff]
        %488 = vset.pattern.permute.xlu0 0
        %489 = vperm.xlu0 %488, %v483
        %v490 = vpop.permute.xlu0 %489
        %493 = vset.pattern.permute.xlu0 0
        %494 = vperm.xlu0 %493, %v484
        %v495 = vpop.permute.xlu0 %494
        %498 = vset.pattern.permute.xlu0 0
        %499 = vperm.xlu0 %498, %v485
        %v500 = vpop.permute.xlu0 %499
        %503 = vset.pattern.permute.xlu0 0
        %504 = vperm.xlu0 %503, %v486
        %v505 = vpop.permute.xlu0 %504
        %v508 = vsel %vm395, %v479, 0
        %v511 = vsel %vm395, %v480, 0
        %v514 = vsel %vm395, %v481, 0
        %v517 = vsel %vm395, %v482, 0
        %519 = vmatprep.subr.mxu0 0.0
        %520 = vmatpush1.msra.mxu0 %v477
        %521 = vmatprep.subr.mxu0 0.0
        %522 = vmatpush1.msra.mxu0 %v478
        %523 = vmatprep.subr.mxu0 0.0
        %524 = vmatpush1.msra.mxu0 0.0
        %525 = vmatprep.subr.mxu0 0.0
        %526 = vmatpush1.msra.mxu0 0.0
        %527 = vmatprep.subr.mxu0 0.0
        %528 = vmatpush1.msra.mxu0 0.0
        %529 = vmatprep.subr.mxu0 0.0
        %530 = vmatpush1.msra.mxu0 0.0
        %531 = vmatprep.subr.mxu0 0.0
        %532 = vmatpush1.msra.mxu0 0.0
        %533 = vmatprep.subr.mxu0 0.0
        %534 = vmatpush1.msra.mxu0 0.0
        %535 = vmatprep.subr.mxu0 0.0
        %536 = vmatpush1.msra.mxu0 0.0
        %537 = vmatprep.subr.mxu0 0.0
        %538 = vmatpush1.msra.mxu0 0.0
        %539 = vmatprep.subr.mxu0 0.0
        %540 = vmatpush1.msra.mxu0 0.0
        %541 = vmatprep.subr.mxu0 0.0
        %542 = vmatpush1.msra.mxu0 0.0
        %543 = vmatprep.subr.mxu0 0.0
        %544 = vmatpush1.msra.mxu0 0.0
        %545 = vmatprep.subr.mxu0 0.0
        %546 = vmatpush1.msra.mxu0 0.0
        %547 = vmatprep.subr.mxu0 0.0
        %548 = vmatpush1.msra.mxu0 0.0
        %549 = vmatprep.subr.mxu0 0.0
        %550 = vmatpush1.msra.mxu0 0.0
        %551 = vmatprep.subr.mxu0 0.0
        %552 = vmatpush1.msra.mxu0 0.0
        %553 = vmatprep.subr.mxu0 0.0
        %554 = vmatpush1.msra.mxu0 0.0
        %555 = vmatprep.subr.mxu0 0.0
        %556 = vmatpush1.msra.mxu0 0.0
        %557 = vmatprep.subr.mxu0 0.0
        %558 = vmatpush1.msra.mxu0 0.0
        %559 = vmatprep.subr.mxu0 0.0
        %560 = vmatpush1.msra.mxu0 0.0
        %561 = vmatprep.subr.mxu0 0.0
        %562 = vmatpush1.msra.mxu0 0.0
        %563 = vmatprep.subr.mxu0 0.0
        %564 = vmatpush1.msra.mxu0 0.0
        %565 = vmatprep.subr.mxu0 0.0
        %566 = vmatpush1.msra.mxu0 0.0
        %567 = vmatprep.subr.mxu0 0.0
        %568 = vmatpush1.msra.mxu0 0.0
        %569 = vmatprep.subr.mxu0 0.0
        %570 = vmatpush1.msra.mxu0 0.0
        %571 = vmatprep.subr.mxu0 0.0
        %572 = vmatpush1.msra.mxu0 0.0
        %573 = vmatprep.subr.mxu0 0.0
        %574 = vmatpush1.msra.mxu0 0.0
        %575 = vmatprep.subr.mxu0 0.0
        %576 = vmatpush1.msra.mxu0 0.0
        %577 = vmatprep.subr.mxu0 0.0
        %578 = vmatpush1.msra.mxu0 0.0
        %579 = vmatprep.subr.mxu0 0.0
        %580 = vmatpush1.msra.mxu0 0.0
        %581 = vmatprep.subr.mxu0 0.0
        %582 = vmatpush1.msra.mxu0 0.0
        %583 = vmatprep.mubr.f32.mxu0 0.0
        %584 = vmatmul.mubr.f32.gmra.mrb[0].mxu0 %v508
        %v585 = vpop.f32.mrb[0].mxu0
        %v586 = vadd.f32 %v490, %v585
        %v587 = vpop.f32.mrb[0].mxu0
        %588 = vmatprep.mubr.f32.mxu0 0.0
        %589 = vmatmul.mubr.f32.gmra.mrb[0].mxu0 %v511
        %v590 = vpop.f32.mrb[0].mxu0
        %v591 = vadd.f32 %v495, %v590
        %v592 = vpop.f32.mrb[0].mxu0
        %593 = vmatprep.mubr.f32.mxu0 0.0
        %594 = vmatmul.mubr.f32.gmra.mrb[0].mxu0 %v514
        %v595 = vpop.f32.mrb[0].mxu0
        %v596 = vadd.f32 %v500, %v595
        %v597 = vpop.f32.mrb[0].mxu0
        %598 = vmatprep.mubr.f32.mxu0 0.0
        %599 = vmatmul.mubr.f32.gmra.mrb[0].mxu0 %v517
        %v600 = vpop.f32.mrb[0].mxu0
        %v601 = vadd.f32 %v505, %v600
        %v602 = vpop.f32.mrb[0].mxu0
        %603 = vdwg.mxu0
        %v604 = vmul.f32 %v596, 0.5
        %v605 = vmul.f32 %v601, 0.5
        %v606 = vmul.f32 %v604, 1.442695
        %v607 = vpow.pop %v606
        %v608 = vmul.f32 %v605, 1.442695
        %v609 = vpow.pop %v608
        %v610 = vmul.f32 %v379, %v607
        %v611 = vmul.f32 %v380, %v609
        %v612 = vadd.f32 %v586, %v610
        %v613 = vadd.f32 %v591, %v611
        %v614 = vld [vmem:[%s5] sm:$0xff]
        %v615 = vld [vmem:[%s5 + $0x8] sm:$0xff]
        %v616 = vld [vmem:[%s6] sm:$0xff]
        %v617 = vld [vmem:[%s6 + $0x8] sm:$0xff]
        %619 = vset.pattern.permute.xlu0 0
        %620 = vperm.xlu0 %619, %v616
        %v621 = vpop.permute.xlu0 %620
        %624 = vset.pattern.permute.xlu0 0
        %625 = vperm.xlu0 %624, %v617
        %v626 = vpop.permute.xlu0 %625
        %v629 = vsel %vm395, %v614, 0
        %v632 = vsel %vm395, %v615, 0
        %634 = vmatprep.subr.mxu0 0.0
        %635 = vmatpush1.msra.mxu0 %v612
        %636 = vmatprep.subr.mxu0 0.0
        %637 = vmatpush1.msra.mxu0 %v613
        %638 = vmatprep.subr.mxu0 0.0
        %639 = vmatpush1.msra.mxu0 0.0
        %640 = vmatprep.subr.mxu0 0.0
        %641 = vmatpush1.msra.mxu0 0.0
        %642 = vmatprep.subr.mxu0 0.0
        %643 = vmatpush1.msra.mxu0 0.0
        %644 = vmatprep.subr.mxu0 0.0
        %645 = vmatpush1.msra.mxu0 0.0
        %646 = vmatprep.subr.mxu0 0.0
        %647 = vmatpush1.msra.mxu0 0.0
        %648 = vmatprep.subr.mxu0 0.0
        %649 = vmatpush1.msra.mxu0 0.0
        %650 = vmatprep.subr.mxu0 0.0
        %651 = vmatpush1.msra.mxu0 0.0
        %652 = vmatprep.subr.mxu0 0.0
        %653 = vmatpush1.msra.mxu0 0.0
        %654 = vmatprep.subr.mxu0 0.0
        %655 = vmatpush1.msra.mxu0 0.0
        %656 = vmatprep.subr.mxu0 0.0
        %657 = vmatpush1.msra.mxu0 0.0
        %658 = vmatprep.subr.mxu0 0.0
        %659 = vmatpush1.msra.mxu0 0.0
        %660 = vmatprep.subr.mxu0 0.0
        %661 = vmatpush1.msra.mxu0 0.0
        %662 = vmatprep.subr.mxu0 0.0
        %663 = vmatpush1.msra.mxu0 0.0
        %664 = vmatprep.subr.mxu0 0.0
        %665 = vmatpush1.msra.mxu0 0.0
        %666 = vmatprep.subr.mxu0 0.0
        %667 = vmatpush1.msra.mxu0 0.0
        %668 = vmatprep.subr.mxu0 0.0
        %669 = vmatpush1.msra.mxu0 0.0
        %670 = vmatprep.subr.mxu0 0.0
        %671 = vmatpush1.msra.mxu0 0.0
        %672 = vmatprep.subr.mxu0 0.0
        %673 = vmatpush1.msra.mxu0 0.0
        %674 = vmatprep.subr.mxu0 0.0
        %675 = vmatpush1.msra.mxu0 0.0
        %676 = vmatprep.subr.mxu0 0.0
        %677 = vmatpush1.msra.mxu0 0.0
        %678 = vmatprep.subr.mxu0 0.0
        %679 = vmatpush1.msra.mxu0 0.0
        %680 = vmatprep.subr.mxu0 0.0
        %681 = vmatpush1.msra.mxu0 0.0
        %682 = vmatprep.subr.mxu0 0.0
        %683 = vmatpush1.msra.mxu0 0.0
        %684 = vmatprep.subr.mxu0 0.0
        %685 = vmatpush1.msra.mxu0 0.0
        %686 = vmatprep.subr.mxu0 0.0
        %687 = vmatpush1.msra.mxu0 0.0
        %688 = vmatprep.subr.mxu0 0.0
        %689 = vmatpush1.msra.mxu0 0.0
        %690 = vmatprep.subr.mxu0 0.0
        %691 = vmatpush1.msra.mxu0 0.0
        %692 = vmatprep.subr.mxu0 0.0
        %693 = vmatpush1.msra.mxu0 0.0
        %694 = vmatprep.subr.mxu0 0.0
        %695 = vmatpush1.msra.mxu0 0.0
        %696 = vmatprep.subr.mxu0 0.0
        %697 = vmatpush1.msra.mxu0 0.0
        %698 = vmatprep.mubr.f32.mxu0 0.0
        %699 = vmatmul.mubr.f32.gmra.mrb[0].mxu0 %v629
        %v700 = vpop.f32.mrb[0].mxu0
        %v701 = vadd.f32 %v621, %v700
        %v702 = vpop.f32.mrb[0].mxu0
        %703 = vmatprep.mubr.f32.mxu0 0.0
        %704 = vmatmul.mubr.f32.gmra.mrb[0].mxu0 %v632
        %v705 = vpop.f32.mrb[0].mxu0
        %v706 = vadd.f32 %v626, %v705
        %v707 = vpop.f32.mrb[0].mxu0
        %708 = vdwg.mxu0
        %v709 = vmax.f32 %v701, 0.0
        %v710 = vmax.f32 %v706, 0.0
        %v711 = vld [vmem:[%s7] sm:$0xff]
        %v712 = vld [vmem:[%s7 + $0x8] sm:$0xff]
        %v713 = vld [vmem:[%s7 + $0x10] sm:$0xff]
        %v714 = vld [vmem:[%s7 + $0x18] sm:$0xff]
        %v715 = vld [vmem:[%s8] sm:$0xff]
        %v716 = vld [vmem:[%s8 + $0x8] sm:$0xff]
        %v717 = vld [vmem:[%s8 + $0x10] sm:$0xff]
        %v718 = vld [vmem:[%s8 + $0x18] sm:$0xff]
        %720 = vset.pattern.permute.xlu0 0
        %721 = vperm.xlu0 %720, %v715
        %v722 = vpop.permute.xlu0 %721
        %725 = vset.pattern.permute.xlu0 0
        %726 = vperm.xlu0 %725, %v716
        %v727 = vpop.permute.xlu0 %726
        %730 = vset.pattern.permute.xlu0 0
        %731 = vperm.xlu0 %730, %v717
        %v732 = vpop.permute.xlu0 %731
        %735 = vset.pattern.permute.xlu0 0
        %736 = vperm.xlu0 %735, %v718
        %v737 = vpop.permute.xlu0 %736
        %v740 = vsel %vm395, %v711, 0
        %v743 = vsel %vm395, %v712, 0
        %v746 = vsel %vm395, %v713, 0
        %v749 = vsel %vm395, %v714, 0
        %751 = vmatprep.subr.mxu0 0.0
        %752 = vmatpush1.msra.mxu0 %v709
        %753 = vmatprep.subr.mxu0 0.0
        %754 = vmatpush1.msra.mxu0 %v710
        %755 = vmatprep.subr.mxu0 0.0
        %756 = vmatpush1.msra.mxu0 0.0
        %757 = vmatprep.subr.mxu0 0.0
        %758 = vmatpush1.msra.mxu0 0.0
        %759 = vmatprep.subr.mxu0 0.0
        %760 = vmatpush1.msra.mxu0 0.0
        %761 = vmatprep.subr.mxu0 0.0
        %762 = vmatpush1.msra.mxu0 0.0
        %763 = vmatprep.subr.mxu0 0.0
        %764 = vmatpush1.msra.mxu0 0.0
        %765 = vmatprep.subr.mxu0 0.0
        %766 = vmatpush1.msra.mxu0 0.0
        %767 = vmatprep.subr.mxu0 0.0
        %768 = vmatpush1.msra.mxu0 0.0
        %769 = vmatprep.subr.mxu0 0.0
        %770 = vmatpush1.msra.mxu0 0.0
        %771 = vmatprep.subr.mxu0 0.0
        %772 = vmatpush1.msra.mxu0 0.0
        %773 = vmatprep.subr.mxu0 0.0
        %774 = vmatpush1.msra.mxu0 0.0
        %775 = vmatprep.subr.mxu0 0.0
        %776 = vmatpush1.msra.mxu0 0.0
        %777 = vmatprep.subr.mxu0 0.0
        %778 = vmatpush1.msra.mxu0 0.0
        %779 = vmatprep.subr.mxu0 0.0
        %780 = vmatpush1.msra.mxu0 0.0
        %781 = vmatprep.subr.mxu0 0.0
        %782 = vmatpush1.msra.mxu0 0.0
        %783 = vmatprep.subr.mxu0 0.0
        %784 = vmatpush1.msra.mxu0 0.0
        %785 = vmatprep.subr.mxu0 0.0
        %786 = vmatpush1.msra.mxu0 0.0
        %787 = vmatprep.subr.mxu0 0.0
        %788 = vmatpush1.msra.mxu0 0.0
        %789 = vmatprep.subr.mxu0 0.0
        %790 = vmatpush1.msra.mxu0 0.0
        %791 = vmatprep.subr.mxu0 0.0
        %792 = vmatpush1.msra.mxu0 0.0
        %793 = vmatprep.subr.mxu0 0.0
        %794 = vmatpush1.msra.mxu0 0.0
        %795 = vmatprep.subr.mxu0 0.0
        %796 = vmatpush1.msra.mxu0 0.0
        %797 = vmatprep.subr.mxu0 0.0
        %798 = vmatpush1.msra.mxu0 0.0
        %799 = vmatprep.subr.mxu0 0.0
        %800 = vmatpush1.msra.mxu0 0.0
        %801 = vmatprep.subr.mxu0 0.0
        %802 = vmatpush1.msra.mxu0 0.0
        %803 = vmatprep.subr.mxu0 0.0
        %804 = vmatpush1.msra.mxu0 0.0
        %805 = vmatprep.subr.mxu0 0.0
        %806 = vmatpush1.msra.mxu0 0.0
        %807 = vmatprep.subr.mxu0 0.0
        %808 = vmatpush1.msra.mxu0 0.0
        %809 = vmatprep.subr.mxu0 0.0
        %810 = vmatpush1.msra.mxu0 0.0
        %811 = vmatprep.subr.mxu0 0.0
        %812 = vmatpush1.msra.mxu0 0.0
        %813 = vmatprep.subr.mxu0 0.0
        %814 = vmatpush1.msra.mxu0 0.0
        %815 = vmatprep.mubr.f32.mxu0 0.0
        %816 = vmatmul.mubr.f32.gmra.mrb[0].mxu0 %v740
        %v817 = vpop.f32.mrb[0].mxu0
        %v818 = vadd.f32 %v722, %v817
        %v819 = vpop.f32.mrb[0].mxu0
        %820 = vmatprep.mubr.f32.mxu0 0.0
        %821 = vmatmul.mubr.f32.gmra.mrb[0].mxu0 %v743
        %v822 = vpop.f32.mrb[0].mxu0
        %v823 = vadd.f32 %v727, %v822
        %v824 = vpop.f32.mrb[0].mxu0
        %825 = vmatprep.mubr.f32.mxu0 0.0
        %826 = vmatmul.mubr.f32.gmra.mrb[0].mxu0 %v746
        %v827 = vpop.f32.mrb[0].mxu0
        %v828 = vadd.f32 %v732, %v827
        %v829 = vpop.f32.mrb[0].mxu0
        %830 = vmatprep.mubr.f32.mxu0 0.0
        %831 = vmatmul.mubr.f32.gmra.mrb[0].mxu0 %v749
        %v832 = vpop.f32.mrb[0].mxu0
        %v833 = vadd.f32 %v737, %v832
        %v834 = vpop.f32.mrb[0].mxu0
        %835 = vdwg.mxu0
        %836 = vst [vmem:[%s376] sm:$0xff] %v818
        %837 = vst [vmem:[%s376 + $0x8] sm:$0xff] %v823
        %838 = vst [vmem:[%s376 + $0x10] sm:$0xff] %v828
        %839 = vst [vmem:[%s376 + $0x18] sm:$0xff] %v833
        %840 = vst [vmem:[%s376 + $0x20] sm:$0xff] %v586
        %841 = vst [vmem:[%s376 + $0x28] sm:$0xff] %v591
        %842 = vst [vmem:[%s376 + $0x30] sm:$0xff] %v596
        %843 = vst [vmem:[%s376 + $0x38] sm:$0xff] %v601
        %844 = vst [vmem:[%s376 + $0x40] sm:$0xff] %v612
        %845 = vst [vmem:[%s376 + $0x48] sm:$0xff] %v613
        %s846 = sand.u32 %s225, 1
        %s847 = scalar_lea.sflag [#allocation4], %s846
        %s848 = sand.u32 %s225, 1
        %s849 = smul.addr %s848, 80
        %s850 = scalar_lea.vmem [#allocation3], %s849
        // Predicated region
        $region95: #{tpu_custom_call.1} parent=89 // pred_check
          %p851 = pneg %p235
        $region96: #{tpu_custom_call.1} parent=89 // pred_check_branch
          %853 = sbr.rel (%p851) target = $region98
        $region97: #{tpu_custom_call.1} parent=89 // pred_region
          %s855 = ssub.s32 1280, 1280
          %856 = vsyncadd %s847, %s855
          %s857 = smul.addr %s23, 128
          %s858 = scalar_lea.hbm %s9, %s857
          %s859 = sshll.u32 %s850, 4
          %s860 = int_to_ptr.vmem [resolvable:$true] %s859
          %865 = dma.vmem_to_hbm [thread:$0]  %s860, 1280, %s858, %s847, 128, 256, 8
        $region98: #{tpu_custom_call.1} parent=89 // pred_fallthru
          _
      $region90: #{tpu_custom_call.1} parent=5 // pred_fallthru
        _
      %p866 = scmp.le.s32.totalorder 2, %s18
      // Predicated region
      $region99: #{tpu_custom_call.1} parent=5 // pred_check
        %p867 = pneg %p866
      $region100: #{tpu_custom_call.1} parent=5 // pred_check_branch
        %869 = sbr.rel (%p867) target = $region102
      $region101: #{tpu_custom_call.1} parent=5 // pred_region
        %s870 = ssub.s32 %s18, 2
        // Predicated region
        $region103: #{tpu_custom_call.1} parent=101 // pred_check
          %p871 = pneg %p241
        $region104: #{tpu_custom_call.1} parent=101 // pred_check_branch
          %873 = sbr.rel (%p871) target = $region106
        $region105: #{tpu_custom_call.1} parent=101 // pred_region
          %s874 = sand.u32 %s226, 1
          %s875 = scalar_lea.sflag [#allocation4], %s874
          %s876 = sand.u32 %s226, 1
          %s877 = smul.addr %s876, 80
          %s878 = scalar_lea.vmem [#allocation3], %s877
          %879 = dma.done %s875, 1280
        $region106: #{tpu_custom_call.1} parent=101 // pred_fallthru
          _
      $region102: #{tpu_custom_call.1} parent=5 // pred_fallthru
        _
    $region6: #{tpu_custom_call.1} parent=1 // loop_footer
      %s22 = sadd.s32 1, %s18
    $region7: #{tpu_custom_call.1} parent=1 // loop_footer_branch
      %17 = sbr.rel target = $region3
    $region8: #{tpu_custom_call.1} parent=1 // loop_exit
      _
    %880 = vsyncpa [#allocation4], 1
    %s881 = scalar_lea.sflag [#allocation4], 1
    %882 = vsyncpa %s881, 1

</llo_original>
